<compile_context>
chip_gen: v6e
topology: v6e:2x2x1
jax: 0.10.0
libtpu: 0.0.40
codegen_flags: <defaults>
</compile_context>

<pallas_src>
import functools

import jax
import jax.numpy as jnp
from jax.experimental import pallas as pl
from jax.experimental.pallas import tpu as pltpu


def _concept_prefix_kernel(patches_ref, wp_ref, wc_ref, wcls_ref, bcls_ref,
                           y_ref, q_scr, w_scr, *, topk, true_c):
    ci = pl.program_id(1)
    n_c = pl.num_programs(1)
    Bb, N, PD = patches_ref.shape
    D = wp_ref.shape[1]
    c_blk = wc_ref.shape[1]

    # ---- c == 0: patch embedding stub + accumulator init --------------------
    # One [Bb*N, PD] @ [PD, D] MXU matmul for the whole batch block; q is kept
    # only as bf16 in VMEM scratch afterwards.
    @pl.when(ci == 0)
    def _():
        patches = patches_ref[...].reshape(Bb * N, PD)
        q = jnp.dot(patches, wp_ref[...], preferred_element_type=jnp.float32)
        q_scr[...] = q.astype(q_scr.dtype).reshape(Bb, N, D)
        w_scr[...] = jnp.zeros_like(w_scr)

    # ---- concept scores for this C tile: [Bb*N, D] @ [D, c_blk] -------------
    qb = q_scr[...].reshape(Bb * N, D)
    s = jnp.dot(qb, wc_ref[...], preferred_element_type=jnp.float32)
    s = s.reshape(Bb, N, c_blk)

    # ---- online top-k + softmax over patches (per (image, concept)) ---------
    # Iteration 0's column max is the global max m; per-iteration column maxima
    # give the denominator directly; exp weights are scattered online into
    # `acc`.  No tie-break (exact f32 ties are essentially impossible).
    neg = jnp.float32(-1e30)
    work = s
    m = jnp.max(work, axis=1, keepdims=True)          # [Bb,1,Cb] = top-1
    pick = work == m
    acc = pick.astype(jnp.float32)                    # exp(m - m) = 1
    denom = jnp.ones_like(m)                          # [Bb,1,Cb]
    for _ in range(topk - 1):
        work = jnp.where(pick, neg, work)
        cmax = jnp.max(work, axis=1, keepdims=True)
        e = jnp.exp(cmax - m)                         # [Bb,1,Cb] EUP work only
        denom = denom + e
        pick = work == cmax
        acc = jnp.where(pick, e, acc)

    # ---- mask padded concepts, fold over C into the per-patch weight --------
    lane = jax.lax.broadcasted_iota(jnp.int32, (1, 1, c_blk), 2)
    valid = (lane + ci * c_blk) < true_c
    inv = pl.reciprocal(denom, approx=True)           # EUP slot
    inv = jnp.where(valid, inv, jnp.float32(0.0))
    # w[b,n] += sum_c score[b,n,c]  (mean over c applied at finalize)
    w_scr[...] += jnp.sum(acc * inv, axis=2)

    # ---- c == last: fold over patches + ReLU + classification head ----------
    @pl.when(ci == n_c - 1)
    def _():
        wmean = w_scr[...] * jnp.float32(1.0 / true_c)          # [Bb, N]
        wb = wmean.astype(q_scr.dtype)[:, None, :]              # [Bb, 1, N]
        # h = sum_n w[b,n] * q[b,n,:]  as a batched MXU matmul (bf16, f32 acc)
        h = jnp.einsum("bon,bnd->bod", wb, q_scr[...],
                       preferred_element_type=jnp.float32)      # [Bb, 1, D]
        h_act = jnp.maximum(h.reshape(Bb, D), 0.0)
        y = jnp.dot(h_act.astype(wcls_ref.dtype), wcls_ref[...],
                    preferred_element_type=jnp.float32)         # [Bb, NCpad]
        y_ref[...] = (y + bcls_ref[...])[None]


def concept_prefix_forward(pixel_values, wpatch, wc, wcls, bcls, *, patch, topk,
                           batch_block=8, concept_block=None,
                           single_buffer_weights=False):
    B, Cin, H, W = pixel_values.shape
    P = patch
    nH, nW = H // P, W // P
    N = nH * nW
    PD = Cin * P * P
    D = wpatch.shape[0]
    C = wc.shape[0]
    NCLS = wcls.shape[0]
    assert topk <= N, "topk must not exceed the number of patch tokens"

    # glue: NCHW -> [B, N, Cin*P*P] patch flattening (matches conv-patch order)
    patches = pixel_values.reshape(B, Cin, nH, P, nW, P)
    patches = patches.transpose(0, 2, 4, 1, 3, 5).reshape(B, N, PD)

    # batch blocking: guarantee >= 2 grid steps when B >= 2 so the "parallel"
    # axis can shard across v7x's two TensorCores (also improves pipelining
    # overlap on v5e/v6e at small B).  On v7x at real BLIP scale, pass
    # batch_block=4 to stay inside the 64 MiB VMEM budget.
    B_blk = min(batch_block, max(1, -(-B // 2)))
    grid_b = -(-B // B_blk)
    Bp = grid_b * B_blk
    if Bp != B:
        # NOTE: padded batch rows are fully processed (wasted work only; their
        # outputs are sliced off below).
        patches = jnp.pad(patches, ((0, Bp - B), (0, 0), (0, 0)))

    # concept (C) tiling: single tile at toy scale, 512-wide tiles otherwise.
    if concept_block is None:
        concept_block = C if C <= 512 else 512
    c_blk = concept_block
    grid_c = -(-C // c_blk)
    Cp = grid_c * c_blk

    # lane-dense output: pad classes to a multiple of 128
    NC_pad = max(128, ((NCLS + 127) // 128) * 128)

    # bf16 MXU operands (f32 accumulation inside the kernel), pre-transposed to
    # [K, N] layout so every in-kernel dot is a clean [M,K]@[K,N].
    bf = jnp.bfloat16
    patches_b = patches.astype(bf)
    wpatch_t = wpatch.T.astype(bf)                                    # [PD, D]
    wc_t = jnp.zeros((D, Cp), bf).at[:, :C].set(wc.T.astype(bf))      # [D, Cp]
    wcls_t = jnp.zeros((D, NC_pad), bf).at[:, :NCLS].set(wcls.T.astype(bf))
    bcls_p = jnp.zeros((1, NC_pad), jnp.float32).at[0, :NCLS].set(
        bcls.astype(jnp.float32))

    def _w_spec(shape, index_map):
        # Grid-invariant weights: optionally single-buffer them (halves their
        # VMEM footprint at zero cost) — enable at real BLIP scale on v7x.
        if single_buffer_weights:
            return pl.BlockSpec(shape, index_map, pipeline_mode=pl.Buffered(1))
        return pl.BlockSpec(shape, index_map)

    # explicit scoped-VMEM limit (defaults are 16/32 MiB, far below physical)
    try:
        vmem_cap = int(pltpu.get_tpu_info().vmem_capacity_bytes)
        vmem_limit = min((vmem_cap * 3) // 4, 100 * 1024 * 1024)
    except Exception:  # pragma: no cover - info query unavailable
        vmem_limit = 64 * 1024 * 1024

    flops = (2 * Bp * N * PD * D          # patch-embed stub
             + 2 * Bp * N * D * Cp        # concept scores
             + 2 * Bp * N * D             # fold
             + 2 * Bp * D * NC_pad)       # classification head
    bytes_accessed = (patches_b.size * 2 + wpatch_t.size * 2 + wc_t.size * 2
                      + wcls_t.size * 2 + bcls_p.size * 4
                      + grid_b * B_blk * NC_pad * 4)
    cost = pl.CostEstimate(flops=int(flops),
                           transcendentals=int(Bp * Cp * topk),
                           bytes_accessed=int(bytes_accessed))

    kernel = functools.partial(_concept_prefix_kernel, topk=topk, true_c=C)
    out = pl.pallas_call(
        kernel,
        out_shape=jax.ShapeDtypeStruct((grid_b, B_blk, NC_pad), jnp.float32),
        grid_spec=pltpu.PrefetchScalarGridSpec(
            num_scalar_prefetch=0,
            grid=(grid_b, grid_c),
            in_specs=[
                pl.BlockSpec((B_blk, N, PD), lambda b, c: (b, 0, 0)),
                _w_spec((PD, D), lambda b, c: (0, 0)),
                pl.BlockSpec((D, c_blk), lambda b, c: (0, c)),
                _w_spec((D, NC_pad), lambda b, c: (0, 0)),
                _w_spec((1, NC_pad), lambda b, c: (0, 0)),
            ],
            out_specs=pl.BlockSpec((1, B_blk, NC_pad), lambda b, c: (b, 0, 0)),
            scratch_shapes=[
                pltpu.VMEM((B_blk, N, D), jnp.bfloat16),   # q (bf16 only)
                pltpu.VMEM((B_blk, N), jnp.float32),       # per-patch weight
            ],
        ),
        compiler_params=pltpu.CompilerParams(
            dimension_semantics=("parallel", "arbitrary"),
            vmem_limit_bytes=int(vmem_limit)),
        cost_estimate=cost,
    )(patches_b, wpatch_t, wc_t, wcls_t, bcls_p)
    out = out.reshape(Bp, NC_pad)
    return out[:B, :NCLS]


def _reference_forward(pixel_values, wpatch, wc, wcls, bcls, *, patch, topk):
    # Pure-JAX reference mirroring the kernel's bf16-operand / f32-accumulate
    # matmul quantization (top-k / softmax / fold stay f32).
    B, Cin, H, W = pixel_values.shape
    P = patch
    D = wpatch.shape[0]
    C = wc.shape[0]
    bf = jnp.bfloat16
    patches = pixel_values.reshape(B, Cin, H // P, P, W // P, P)
    patches = patches.transpose(0, 2, 4, 1, 3, 5).reshape(B, -1, Cin * P * P)
    q = jnp.einsum("bnp,dp->bnd", patches.astype(bf), wpatch.astype(bf),
                   preferred_element_type=jnp.float32)            # [B, N, D]
    qk = jnp.einsum("bnd,cd->bcn", q.astype(bf), wc.astype(bf),
                    preferred_element_type=jnp.float32)           # [B, C, N]
    vals, idx = jax.lax.top_k(qk, topk)                           # [B, C, K]
    score = jax.nn.softmax(vals, axis=-1)
    qg = jnp.take_along_axis(
        jnp.broadcast_to(q[:, None], (B, C, q.shape[1], D)),
        idx[..., None], axis=2)                                   # [B, C, K, D]
    h = (qg * score[..., None]).sum(2).mean(1)                    # [B, D]
    h_act = jnp.maximum(h, 0.0)
    y = jnp.einsum("bd,cd->bc", h_act.astype(bf), wcls.astype(bf),
                   preferred_element_type=jnp.float32) + bcls
    return y


if __name__ == "__main__":
    key = jax.random.PRNGKey(0)
    B, Cin, H, W = 2, 3, 32, 32
    P = 8                      # patch size  -> N = 16 patch tokens
    D = 32                     # emb_dim (stand-in for BLIP vision hidden size)
    num_concepts = 8
    num_classes = 5
    topk = 4

    k1, k2, k3, k4, k5 = jax.random.split(key, 5)
    pixel_values = jax.random.normal(k1, (B, Cin, H, W), jnp.float32)
    wpatch = jax.random.normal(k2, (D, Cin * P * P), jnp.float32) * 0.05
    wc = jax.random.normal(k3, (num_concepts, D), jnp.float32) * 0.1
    wcls = jax.random.normal(k4, (num_classes, D), jnp.float32) * 0.1
    bcls = jax.random.normal(k5, (num_classes,), jnp.float32) * 0.1

    y = concept_prefix_forward(pixel_values, wpatch, wc, wcls, bcls,
                               patch=P, topk=topk)
    y = jax.block_until_ready(y)

    y_ref = _reference_forward(pixel_values, wpatch, wc, wcls, bcls,
                               patch=P, topk=topk)
    assert y.shape == (B, num_classes)
    assert jnp.allclose(y, y_ref, atol=2e-2, rtol=2e-2), (y, y_ref)
    print("KERNEL_OK")
</pallas_src>

<mosaic_0001>
module attributes {stable_mosaic.version = 11 : i64} {
  func.func @_concept_prefix_kernel(%arg0: i32, %arg1: i32, %arg2: memref<1x16x192xbf16, #tpu.memory_space<vmem>>, %arg3: memref<192x32xbf16, #tpu.memory_space<vmem>>, %arg4: memref<32x8xbf16, #tpu.memory_space<vmem>>, %arg5: memref<32x128xbf16, #tpu.memory_space<vmem>>, %arg6: memref<1x128xf32, #tpu.memory_space<vmem>>, %arg7: memref<1x1x128xf32, #tpu.memory_space<vmem>>, %arg8: memref<1x16x32xbf16, #tpu.memory_space<vmem>>, %arg9: memref<1x16xf32, #tpu.memory_space<vmem>>) attributes {dimension_semantics = [#tpu.dimension_semantics<parallel>, #tpu.dimension_semantics<arbitrary>], iteration_bounds = array<i64: 2, 1>, scalar_prefetch = 0 : i64, scratch_operands = 2 : i64, tpu.core_type = #tpu.core_type<tc>, window_params = [{transform_indices = @transform_0, window_bounds = array<i64: 1, 16, 192>}, {pipeline_mode = #tpu.pipeline_mode<synchronous>, transform_indices = @transform_1, window_bounds = array<i64: 192, 32>}, {transform_indices = @transform_2, window_bounds = array<i64: 32, 8>}, {pipeline_mode = #tpu.pipeline_mode<synchronous>, transform_indices = @transform_3, window_bounds = array<i64: 32, 128>}, {pipeline_mode = #tpu.pipeline_mode<synchronous>, transform_indices = @transform_4, window_bounds = array<i64: 1, 128>}, {transform_indices = @transform_5, window_bounds = array<i64: 1, 1, 128>}]} {
    %c0_i32 = arith.constant 0 : i32
    %0 = arith.cmpi eq, %arg1, %c0_i32 : i32
    %1 = arith.extui %0 : i1 to i32
    %c0_i32_0 = arith.constant 0 : i32
    %2 = arith.cmpi ne, %1, %c0_i32_0 : i32
    scf.if %2 {
      %c0_22 = arith.constant 0 : index
      %c0_23 = arith.constant 0 : index
      %c0_24 = arith.constant 0 : index
      %69 = vector.load %arg2[%c0_22, %c0_23, %c0_24] : memref<1x16x192xbf16, #tpu.memory_space<vmem>>, vector<1x16x192xbf16>
      %70 = vector.shape_cast %69 : vector<1x16x192xbf16> to vector<16x192xbf16>
      %c0_25 = arith.constant 0 : index
      %c0_26 = arith.constant 0 : index
      %71 = vector.load %arg3[%c0_25, %c0_26] : memref<192x32xbf16, #tpu.memory_space<vmem>>, vector<192x32xbf16>
      %cst_27 = arith.constant dense<0.000000e+00> : vector<16x32xf32>
      %72 = tpu.matmul %70, %71, %cst_27 {dimension_numbers = #tpu.dot_dimension_numbers<[1], [0], [0], [1], [0, 0, 1, 1], [], []>} : vector<16x192xbf16>, vector<192x32xbf16>, vector<16x32xf32> -> vector<16x32xf32>
      %73 = arith.truncf %72 : vector<16x32xf32> to vector<16x32xbf16>
      %74 = vector.shape_cast %73 : vector<16x32xbf16> to vector<1x16x32xbf16>
      %c0_28 = arith.constant 0 : index
      %c0_29 = arith.constant 0 : index
      %c0_30 = arith.constant 0 : index
      %75 = vector.load %arg8[%c0_28, %c0_29, %c0_30] : memref<1x16x32xbf16, #tpu.memory_space<vmem>>, vector<1x16x32xbf16>
      tpu.vector_store %arg8[%c0_28, %c0_29, %c0_30], %74 {strides = array<i32>} : memref<1x16x32xbf16, #tpu.memory_space<vmem>>, vector<1x16x32xbf16>,
      %cst_31 = arith.constant 0.000000e+00 : f32
      %76 = vector.broadcast %cst_31 : f32 to vector<1x16xf32>
      %c0_32 = arith.constant 0 : index
      %c0_33 = arith.constant 0 : index
      %77 = vector.load %arg9[%c0_32, %c0_33] : memref<1x16xf32, #tpu.memory_space<vmem>>, vector<1x16xf32>
      tpu.vector_store %arg9[%c0_32, %c0_33], %76 {strides = array<i32>} : memref<1x16xf32, #tpu.memory_space<vmem>>, vector<1x16xf32>,
    } else {
    }
    %c0 = arith.constant 0 : index
    %c0_1 = arith.constant 0 : index
    %c0_2 = arith.constant 0 : index
    %3 = vector.load %arg8[%c0, %c0_1, %c0_2] : memref<1x16x32xbf16, #tpu.memory_space<vmem>>, vector<1x16x32xbf16>
    %4 = vector.shape_cast %3 : vector<1x16x32xbf16> to vector<16x32xbf16>
    %c0_3 = arith.constant 0 : index
    %c0_4 = arith.constant 0 : index
    %5 = vector.load %arg4[%c0_3, %c0_4] : memref<32x8xbf16, #tpu.memory_space<vmem>>, vector<32x8xbf16>
    %cst = arith.constant dense<0.000000e+00> : vector<16x8xf32>
    %6 = tpu.matmul %4, %5, %cst {dimension_numbers = #tpu.dot_dimension_numbers<[1], [0], [0], [1], [0, 0, 1, 1], [], []>} : vector<16x32xbf16>, vector<32x8xbf16>, vector<16x8xf32> -> vector<16x8xf32>
    %7 = vector.shape_cast %6 : vector<16x8xf32> to vector<1x16x8xf32>
    %cst_5 = arith.constant dense<0xFF800000> : vector<1x8xf32>
    %8 = vector.multi_reduction <maximumf>, %7, %cst_5 [1] : vector<1x16x8xf32> to vector<1x8xf32>
    %9 = vector.shape_cast %8 : vector<1x8xf32> to vector<1x1x8xf32>
    %10 = vector.broadcast %9 : vector<1x1x8xf32> to vector<1x16x8xf32>
    %11 = arith.cmpf oeq, %7, %10 : vector<1x16x8xf32>
    %12 = arith.extui %11 : vector<1x16x8xi1> to vector<1x16x8xi32>
    %13 = arith.sitofp %12 : vector<1x16x8xi32> to vector<1x16x8xf32>
    %cst_6 = arith.constant 1.000000e+00 : f32
    %14 = vector.broadcast %cst_6 : f32 to vector<1x1x8xf32>
    %cst_7 = arith.constant -1.000000e+30 : f32
    %15 = vector.broadcast %cst_7 : f32 to vector<1x16x8xf32>
    %16 = arith.select %11, %15, %7 : vector<1x16x8xi1>, vector<1x16x8xf32>
    %cst_8 = arith.constant dense<0xFF800000> : vector<1x8xf32>
    %17 = vector.multi_reduction <maximumf>, %16, %cst_8 [1] : vector<1x16x8xf32> to vector<1x8xf32>
    %18 = vector.shape_cast %17 : vector<1x8xf32> to vector<1x1x8xf32>
    %19 = arith.subf %18, %9 : vector<1x1x8xf32>
    %20 = math.exp %19 : vector<1x1x8xf32>
    %21 = arith.addf %14, %20 : vector<1x1x8xf32>
    %22 = vector.broadcast %18 : vector<1x1x8xf32> to vector<1x16x8xf32>
    %23 = arith.cmpf oeq, %16, %22 : vector<1x16x8xf32>
    %24 = vector.shape_cast %20 : vector<1x1x8xf32> to vector<1x1x8xf32>
    %25 = vector.broadcast %24 : vector<1x1x8xf32> to vector<1x16x8xf32>
    %26 = arith.select %23, %25, %13 : vector<1x16x8xi1>, vector<1x16x8xf32>
    %cst_9 = arith.constant -1.000000e+30 : f32
    %27 = vector.broadcast %cst_9 : f32 to vector<1x16x8xf32>
    %28 = arith.select %23, %27, %16 : vector<1x16x8xi1>, vector<1x16x8xf32>
    %cst_10 = arith.constant dense<0xFF800000> : vector<1x8xf32>
    %29 = vector.multi_reduction <maximumf>, %28, %cst_10 [1] : vector<1x16x8xf32> to vector<1x8xf32>
    %30 = vector.shape_cast %29 : vector<1x8xf32> to vector<1x1x8xf32>
    %31 = arith.subf %30, %9 : vector<1x1x8xf32>
    %32 = math.exp %31 : vector<1x1x8xf32>
    %33 = arith.addf %21, %32 : vector<1x1x8xf32>
    %34 = vector.broadcast %30 : vector<1x1x8xf32> to vector<1x16x8xf32>
    %35 = arith.cmpf oeq, %28, %34 : vector<1x16x8xf32>
    %36 = vector.shape_cast %32 : vector<1x1x8xf32> to vector<1x1x8xf32>
    %37 = vector.broadcast %36 : vector<1x1x8xf32> to vector<1x16x8xf32>
    %38 = arith.select %35, %37, %26 : vector<1x16x8xi1>, vector<1x16x8xf32>
    %cst_11 = arith.constant -1.000000e+30 : f32
    %39 = vector.broadcast %cst_11 : f32 to vector<1x16x8xf32>
    %40 = arith.select %35, %39, %28 : vector<1x16x8xi1>, vector<1x16x8xf32>
    %cst_12 = arith.constant dense<0xFF800000> : vector<1x8xf32>
    %41 = vector.multi_reduction <maximumf>, %40, %cst_12 [1] : vector<1x16x8xf32> to vector<1x8xf32>
    %42 = vector.shape_cast %41 : vector<1x8xf32> to vector<1x1x8xf32>
    %43 = arith.subf %42, %9 : vector<1x1x8xf32>
    %44 = math.exp %43 : vector<1x1x8xf32>
    %45 = arith.addf %33, %44 : vector<1x1x8xf32>
    %46 = vector.broadcast %42 : vector<1x1x8xf32> to vector<1x16x8xf32>
    %47 = arith.cmpf oeq, %40, %46 : vector<1x16x8xf32>
    %48 = vector.shape_cast %44 : vector<1x1x8xf32> to vector<1x1x8xf32>
    %49 = vector.broadcast %48 : vector<1x1x8xf32> to vector<1x16x8xf32>
    %50 = arith.select %47, %49, %38 : vector<1x16x8xi1>, vector<1x16x8xf32>
    %51 = tpu.iota {dimensions = array<i32: 2>} : vector<1x1x8xi32>
    %c8_i32 = arith.constant 8 : i32
    %52 = arith.muli %arg1, %c8_i32 : i32
    %53 = vector.broadcast %52 : i32 to vector<1x1x8xi32>
    %54 = arith.addi %51, %53 : vector<1x1x8xi32>
    %c8_i32_13 = arith.constant 8 : i32
    %55 = vector.broadcast %c8_i32_13 : i32 to vector<1x1x8xi32>
    %56 = arith.cmpi slt, %54, %55 : vector<1x1x8xi32>
    %57 = tpu.reciprocal %45 {approx = true} : vector<1x1x8xf32> -> vector<1x1x8xf32>
    %cst_14 = arith.constant 0.000000e+00 : f32
    %58 = vector.broadcast %cst_14 : f32 to vector<1x1x8xf32>
    %59 = arith.select %56, %57, %58 : vector<1x1x8xi1>, vector<1x1x8xf32>
    %c0_15 = arith.constant 0 : index
    %c0_16 = arith.constant 0 : index
    %60 = vector.load %arg9[%c0_15, %c0_16] : memref<1x16xf32, #tpu.memory_space<vmem>>, vector<1x16xf32>
    %61 = vector.broadcast %59 : vector<1x1x8xf32> to vector<1x16x8xf32>
    %62 = arith.mulf %50, %61 : vector<1x16x8xf32>
    %cst_17 = arith.constant dense<0.000000e+00> : vector<1x16xf32>
    %63 = vector.multi_reduction <add>, %62, %cst_17 [2] : vector<1x16x8xf32> to vector<1x16xf32>
    %64 = arith.addf %60, %63 : vector<1x16xf32>
    %c0_18 = arith.constant 0 : index
    %c0_19 = arith.constant 0 : index
    %65 = vector.load %arg9[%c0_18, %c0_19] : memref<1x16xf32, #tpu.memory_space<vmem>>, vector<1x16xf32>
    tpu.vector_store %arg9[%c0_18, %c0_19], %64 {strides = array<i32>} : memref<1x16xf32, #tpu.memory_space<vmem>>, vector<1x16xf32>,
    %c0_i32_20 = arith.constant 0 : i32
    %66 = arith.cmpi eq, %arg1, %c0_i32_20 : i32
    %67 = arith.extui %66 : i1 to i32
    %c0_i32_21 = arith.constant 0 : i32
    %68 = arith.cmpi ne, %67, %c0_i32_21 : i32
    scf.if %68 {
      %c0_22 = arith.constant 0 : index
      %c0_23 = arith.constant 0 : index
      %69 = vector.load %arg9[%c0_22, %c0_23] : memref<1x16xf32, #tpu.memory_space<vmem>>, vector<1x16xf32>
      %cst_24 = arith.constant 1.250000e-01 : f32
      %70 = vector.broadcast %cst_24 : f32 to vector<1x16xf32>
      %71 = arith.mulf %69, %70 : vector<1x16xf32>
      %72 = arith.truncf %71 : vector<1x16xf32> to vector<1x16xbf16>
      %73 = vector.shape_cast %72 : vector<1x16xbf16> to vector<1x1x16xbf16>
      %c0_25 = arith.constant 0 : index
      %c0_26 = arith.constant 0 : index
      %c0_27 = arith.constant 0 : index
      %74 = vector.load %arg8[%c0_25, %c0_26, %c0_27] : memref<1x16x32xbf16, #tpu.memory_space<vmem>>, vector<1x16x32xbf16>
      "tpu.trace_start"() <{level = 10 : i32, message = "bon,bnd->bod"}> : () -> ()
      %cst_28 = arith.constant dense<0.000000e+00> : vector<1x1x32xf32>
      %75 = tpu.matmul %73, %74, %cst_28 {dimension_numbers = #tpu.dot_dimension_numbers<[2], [1], [1], [2], [0, 0, 0, 1, 1, 2], [0], [0]>} : vector<1x1x16xbf16>, vector<1x16x32xbf16>, vector<1x1x32xf32> -> vector<1x1x32xf32>
      "tpu.trace_stop"() : () -> ()
      %76 = vector.shape_cast %75 : vector<1x1x32xf32> to vector<1x32xf32>
      %cst_29 = arith.constant 0.000000e+00 : f32
      %77 = vector.broadcast %cst_29 : f32 to vector<1x32xf32>
      %78 = arith.maximumf %76, %77 : vector<1x32xf32>
      %79 = arith.truncf %78 : vector<1x32xf32> to vector<1x32xbf16>
      %c0_30 = arith.constant 0 : index
      %c0_31 = arith.constant 0 : index
      %80 = vector.load %arg5[%c0_30, %c0_31] : memref<32x128xbf16, #tpu.memory_space<vmem>>, vector<32x128xbf16>
      %cst_32 = arith.constant dense<0.000000e+00> : vector<1x128xf32>
      %81 = tpu.matmul %79, %80, %cst_32 {dimension_numbers = #tpu.dot_dimension_numbers<[1], [0], [0], [1], [0, 0, 1, 1], [], []>} : vector<1x32xbf16>, vector<32x128xbf16>, vector<1x128xf32> -> vector<1x128xf32>
      %c0_33 = arith.constant 0 : index
      %c0_34 = arith.constant 0 : index
      %82 = vector.load %arg6[%c0_33, %c0_34] : memref<1x128xf32, #tpu.memory_space<vmem>>, vector<1x128xf32>
      %83 = arith.addf %81, %82 : vector<1x128xf32>
      %84 = vector.shape_cast %83 : vector<1x128xf32> to vector<1x1x128xf32>
      %c0_35 = arith.constant 0 : index
      %c0_36 = arith.constant 0 : index
      %c0_37 = arith.constant 0 : index
      %85 = vector.load %arg7[%c0_35, %c0_36, %c0_37] : memref<1x1x128xf32, #tpu.memory_space<vmem>>, vector<1x1x128xf32>
      tpu.vector_store %arg7[%c0_35, %c0_36, %c0_37], %84 {strides = array<i32>} : memref<1x1x128xf32, #tpu.memory_space<vmem>>, vector<1x1x128xf32>,
    } else {
    }
    return
  }
  func.func @transform_0(%arg0: i32, %arg1: i32) -> (i32, i32, i32) {
    %c0_i32 = arith.constant 0 : i32
    %c0_i32_0 = arith.constant 0 : i32
    %c0_i32_1 = arith.constant 0 : i32
    return %arg0, %c0_i32, %c0_i32_0 : i32, i32, i32
  }
  func.func @transform_1(%arg0: i32, %arg1: i32) -> (i32, i32) {
    %c0_i32 = arith.constant 0 : i32
    %c0_i32_0 = arith.constant 0 : i32
    %c0_i32_1 = arith.constant 0 : i32
    return %c0_i32, %c0_i32_0 : i32, i32
  }
  func.func @transform_2(%arg0: i32, %arg1: i32) -> (i32, i32) {
    %c0_i32 = arith.constant 0 : i32
    %c0_i32_0 = arith.constant 0 : i32
    return %c0_i32, %arg1 : i32, i32
  }
  func.func @transform_3(%arg0: i32, %arg1: i32) -> (i32, i32) {
    %c0_i32 = arith.constant 0 : i32
    %c0_i32_0 = arith.constant 0 : i32
    %c0_i32_1 = arith.constant 0 : i32
    return %c0_i32, %c0_i32_0 : i32, i32
  }
  func.func @transform_4(%arg0: i32, %arg1: i32) -> (i32, i32) {
    %c0_i32 = arith.constant 0 : i32
    %c0_i32_0 = arith.constant 0 : i32
    %c0_i32_1 = arith.constant 0 : i32
    return %c0_i32, %c0_i32_0 : i32, i32
  }
  func.func @transform_5(%arg0: i32, %arg1: i32) -> (i32, i32, i32) {
    %c0_i32 = arith.constant 0 : i32
    %c0_i32_0 = arith.constant 0 : i32
    %c0_i32_1 = arith.constant 0 : i32
    return %arg0, %c0_i32, %c0_i32_0 : i32, i32, i32
  }
}

</mosaic_0001>

<llo_original>
// kernel: tpu_custom_call.1
$region0: #{tpu_custom_call.1}
  #allocation0 [shape = 'u32[]', space=smem, size = 0x4, offset = 0x4, fixed_abs, tag = 'smem constant byte address 0x4 - core index']
  #allocation1 [shape = 'u32[144,128]{1,0:T(1,128)}', space=vmem, size = 0x12000, scoped, tag = 'internal scratch']
  #allocation2 [shape = 'bf16[1,16,32]{2,1,0:T(8,128)(2,1)}', space=vmem, size = 0x1000, scoped, tag = 'scratch operand']
  #allocation3 [shape = 'f32[1,16]{1,0:T(1,128)}', space=vmem, size = 0x200, scoped, tag = 'scratch operand']
  %s0 = inlined_call_operand.vmem [shape: bf16[2,16,192], index: 0, kind: input, shape index: {}]
  %s1 = inlined_call_operand.vmem [shape: bf16[192,32], index: 1, kind: input, shape index: {}]
  %s2 = inlined_call_operand.vmem [shape: bf16[32,8], index: 2, kind: input, shape index: {}]
  %s3 = inlined_call_operand.vmem [shape: bf16[32,128], index: 3, kind: input, shape index: {}]
  %s4 = inlined_call_operand.vmem [shape: f32[1,128], index: 4, kind: input, shape index: {}]
  %s5 = inlined_call_operand.hbm [shape: f32[2,1,128], index: 5, kind: output, shape index: {}]
  %s6 = sld [smem:[#allocation0]]
  $region61: #{tpu_custom_call.1} parent=0
    _
  %s8 = ssub.s32 1, %s6
  %s9 = scalar_select 0, %s8, %s6
  $region1: #{tpu_custom_call.1} parent=0
    #allocation4 [shape = 'u8[1024]{0}', space=vmem, size = 0x400, scoped, tag = 'output window, operand 0']
    #allocation5 [shape = 's32[2]{0}', space=sflag, size = 0x8, scoped, tag = 'scoped memory for tpu_custom_call.1']
    %10 = vsyncpa [#allocation5], 0
    %s11 = scalar_lea.sflag [#allocation5], 1
    %12 = vsyncpa %s11, 0
    loop: start=0, step=1, limit=4
    $region2: #{tpu_custom_call.1} parent=1 // loop_pre_header
      _
    $region3: #{tpu_custom_call.1} parent=1 // loop_header
      %s14 = sphi 0, %s18
      %p15 = scmp.ge.s32.totalorder %s14, 4
      %s21 = sphi 0, %s33
      %s22 = sphi 0, %s29
      %s23 = sphi 0, %s21
      %s24 = sphi 0, %s22
      %s25 = sphi 0, %s23
      %s26 = sphi 0, %s24
      %s36 = sphi 0, %s38
      %s39 = sphi 0, %s36
      %s40 = sphi 0, %s39
      %s56 = sphi 0, %s40
      %s60 = sphi 0, %s60
      %s62 = sphi 0, %s60
      %s63 = sphi 0, %s62
      %s77 = sphi 0, %s63
      %s83 = sphi 0, %s85
      %s86 = sphi 0, %s83
      %s87 = sphi 0, %s86
      %s103 = sphi 0, %s87
      %s107 = sphi 0, %s107
      %s109 = sphi 0, %s107
      %s110 = sphi 0, %s109
      %s124 = sphi 0, %s110
      %s128 = sphi 0, %s128
      %s130 = sphi 0, %s128
      %s131 = sphi 0, %s130
      %s145 = sphi 0, %s131
      %s151 = sphi 0, %s153
      %s154 = sphi 0, %s151
      %s155 = sphi 0, %s154
      %s171 = sphi 0, %s155
    $region4: #{tpu_custom_call.1} parent=1 // loop_header_branch
      %17 = sbr.rel (%p15) target = $region8
    $region5: #{tpu_custom_call.1} parent=1 // loop_body
      %s19 = ssub.s32 %s14, 1
      %s20 = ssub.s32 %s14, 2
      %s27 = sadd.s32 1, %s22
      %p28 = scmp.ge.s32.totalorder %s27, 1
      %s29 = scalar_select %p28, 0, %s27
      %s30 = sadd.s32 1, %s21
      %s31 = scalar_select %p28, %s30, %s21
      %p32 = scmp.ge.s32.totalorder %s31, 2
      %s33 = scalar_select %p32, 0, %s31
      %s34 = ssub.s32 %s21, %s33
      %p35 = scmp.eq.s32.totalorder %s34, 0
      %s37 = sadd.s32 %s36, 1
      %s38 = scalar_select %p35, %s36, %s37
      %p41 = pneg %p35
      %p42 = scmp.eq.s32.totalorder %s14, 1
      %p43 = por %p41, %p42
      %p44 = scmp.ne.s32.totalorder %s36, %s39
      %p45 = scmp.eq.s32.totalorder %s14, 0
      %p46 = por %p44, %p45
      %p47 = scmp.ne.s32.totalorder %s36, %s39
      %p48 = scmp.eq.s32.totalorder %s19, 1
      %p49 = por %p47, %p48
      %p50 = scmp.ne.s32.totalorder %s39, %s40
      %p51 = scmp.eq.s32.totalorder %s19, 0
      %p52 = por %p50, %p51
      %p53 = scmp.ne.s32.totalorder %s39, %s40
      %p54 = scmp.eq.s32.totalorder %s20, 1
      %p55 = por %p53, %p54
      %p57 = scmp.ne.s32.totalorder %s40, %s56
      %p58 = scmp.eq.s32.totalorder %s20, 0
      %p59 = por %p57, %p58
      %s61 = sadd.s32 %s60, 1
      %p64 = scmp.eq.s32.totalorder %s14, 1
      %p65 = scmp.ne.s32.totalorder %s60, %s62
      %p66 = scmp.eq.s32.totalorder %s14, 0
      %p67 = por %p65, %p66
      %p68 = scmp.ne.s32.totalorder %s60, %s62
      %p69 = scmp.eq.s32.totalorder %s19, 1
      %p70 = por %p68, %p69
      %p71 = scmp.ne.s32.totalorder %s62, %s63
      %p72 = scmp.eq.s32.totalorder %s19, 0
      %p73 = por %p71, %p72
      %p74 = scmp.ne.s32.totalorder %s62, %s63
      %p75 = scmp.eq.s32.totalorder %s20, 1
      %p76 = por %p74, %p75
      %p78 = scmp.ne.s32.totalorder %s63, %s77
      %p79 = scmp.eq.s32.totalorder %s20, 0
      %p80 = por %p78, %p79
      %s81 = ssub.s32 %s22, %s29
      %p82 = scmp.eq.s32.totalorder %s81, 0
      %s84 = sadd.s32 %s83, 1
      %s85 = scalar_select %p82, %s83, %s84
      %p88 = pneg %p82
      %p89 = scmp.eq.s32.totalorder %s14, 1
      %p90 = por %p88, %p89
      %p91 = scmp.ne.s32.totalorder %s83, %s86
      %p92 = scmp.eq.s32.totalorder %s14, 0
      %p93 = por %p91, %p92
      %p94 = scmp.ne.s32.totalorder %s83, %s86
      %p95 = scmp.eq.s32.totalorder %s19, 1
      %p96 = por %p94, %p95
      %p97 = scmp.ne.s32.totalorder %s86, %s87
      %p98 = scmp.eq.s32.totalorder %s19, 0
      %p99 = por %p97, %p98
      %p100 = scmp.ne.s32.totalorder %s86, %s87
      %p101 = scmp.eq.s32.totalorder %s20, 1
      %p102 = por %p100, %p101
      %p104 = scmp.ne.s32.totalorder %s87, %s103
      %p105 = scmp.eq.s32.totalorder %s20, 0
      %p106 = por %p104, %p105
      %s108 = sadd.s32 %s107, 1
      %p111 = scmp.eq.s32.totalorder %s14, 1
      %p112 = scmp.ne.s32.totalorder %s107, %s109
      %p113 = scmp.eq.s32.totalorder %s14, 0
      %p114 = por %p112, %p113
      %p115 = scmp.ne.s32.totalorder %s107, %s109
      %p116 = scmp.eq.s32.totalorder %s19, 1
      %p117 = por %p115, %p116
      %p118 = scmp.ne.s32.totalorder %s109, %s110
      %p119 = scmp.eq.s32.totalorder %s19, 0
      %p120 = por %p118, %p119
      %p121 = scmp.ne.s32.totalorder %s109, %s110
      %p122 = scmp.eq.s32.totalorder %s20, 1
      %p123 = por %p121, %p122
      %p125 = scmp.ne.s32.totalorder %s110, %s124
      %p126 = scmp.eq.s32.totalorder %s20, 0
      %p127 = por %p125, %p126
      %s129 = sadd.s32 %s128, 1
      %p132 = scmp.eq.s32.totalorder %s14, 1
      %p133 = scmp.ne.s32.totalorder %s128, %s130
      %p134 = scmp.eq.s32.totalorder %s14, 0
      %p135 = por %p133, %p134
      %p136 = scmp.ne.s32.totalorder %s128, %s130
      %p137 = scmp.eq.s32.totalorder %s19, 1
      %p138 = por %p136, %p137
      %p139 = scmp.ne.s32.totalorder %s130, %s131
      %p140 = scmp.eq.s32.totalorder %s19, 0
      %p141 = por %p139, %p140
      %p142 = scmp.ne.s32.totalorder %s130, %s131
      %p143 = scmp.eq.s32.totalorder %s20, 1
      %p144 = por %p142, %p143
      %p146 = scmp.ne.s32.totalorder %s131, %s145
      %p147 = scmp.eq.s32.totalorder %s20, 0
      %p148 = por %p146, %p147
      %s149 = ssub.s32 %s21, %s33
      %p150 = scmp.eq.s32.totalorder %s149, 0
      %s152 = sadd.s32 %s151, 1
      %s153 = scalar_select %p150, %s151, %s152
      %p156 = pneg %p150
      %p157 = scmp.eq.s32.totalorder %s14, 1
      %p158 = por %p156, %p157
      %p159 = scmp.ne.s32.totalorder %s151, %s154
      %p160 = scmp.eq.s32.totalorder %s14, 0
      %p161 = por %p159, %p160
      %p162 = scmp.ne.s32.totalorder %s151, %s154
      %p163 = scmp.eq.s32.totalorder %s19, 1
      %p164 = por %p162, %p163
      %p165 = scmp.ne.s32.totalorder %s154, %s155
      %p166 = scmp.eq.s32.totalorder %s19, 0
      %p167 = por %p165, %p166
      %p168 = scmp.ne.s32.totalorder %s154, %s155
      %p169 = scmp.eq.s32.totalorder %s20, 1
      %p170 = por %p168, %p169
      %p172 = scmp.ne.s32.totalorder %s155, %s171
      %p173 = scmp.eq.s32.totalorder %s20, 0
      %p174 = por %p172, %p173
      %p175 = scmp.le.s32.totalorder 1, %s14
      %p176 = scmp.lt.s32.totalorder %s14, 3
      %p177 = pnand %p175, %p176
      %p178 = pneg %p177
      // Predicated region
      $region9: #{tpu_custom_call.1} parent=5 // pred_check
        _
      $region10: #{tpu_custom_call.1} parent=5 // pred_check_branch
        %180 = sbr.rel (%p177) target = $region12
      $region11: #{tpu_custom_call.1} parent=5 // pred_region
        %s181 = ssub.s32 %s14, 1
        // Predicated region
        $region13: #{tpu_custom_call.1} parent=11 // pred_check
          %p182 = pneg %p73
        $region14: #{tpu_custom_call.1} parent=11 // pred_check_branch
          %184 = sbr.rel (%p182) target = $region16
        $region15: #{tpu_custom_call.1} parent=11 // pred_region
          _
        $region16: #{tpu_custom_call.1} parent=11 // pred_fallthru
          _
        // Predicated region
        $region17: #{tpu_custom_call.1} parent=11 // pred_check
          %p185 = pneg %p99
        $region18: #{tpu_custom_call.1} parent=11 // pred_check_branch
          %187 = sbr.rel (%p185) target = $region20
        $region19: #{tpu_custom_call.1} parent=11 // pred_region
          %p188 = scmp.lt.s32.totalorder %s24, 0
          %s189 = scalar_select %p188, %s24, 0
          %s190 = smul.addr %s189, 4
          %s191 = scalar_lea.vmem %s2, %s190
        $region20: #{tpu_custom_call.1} parent=11 // pred_fallthru
          _
        // Predicated region
        $region21: #{tpu_custom_call.1} parent=11 // pred_check
          %p192 = pneg %p120
        $region22: #{tpu_custom_call.1} parent=11 // pred_check_branch
          %194 = sbr.rel (%p192) target = $region24
        $region23: #{tpu_custom_call.1} parent=11 // pred_region
          _
        $region24: #{tpu_custom_call.1} parent=11 // pred_fallthru
          _
        // Predicated region
        $region25: #{tpu_custom_call.1} parent=11 // pred_check
          %p195 = pneg %p141
        $region26: #{tpu_custom_call.1} parent=11 // pred_check_branch
          %197 = sbr.rel (%p195) target = $region28
        $region27: #{tpu_custom_call.1} parent=11 // pred_region
          _
        $region28: #{tpu_custom_call.1} parent=11 // pred_fallthru
          _
      $region12: #{tpu_custom_call.1} parent=5 // pred_fallthru
        _
      %p198 = scmp.lt.s32.totalorder %s14, 2
      // Predicated region
      $region29: #{tpu_custom_call.1} parent=5 // pred_check
        %p199 = pneg %p198
      $region30: #{tpu_custom_call.1} parent=5 // pred_check_branch
        %201 = sbr.rel (%p199) target = $region32
      $region31: #{tpu_custom_call.1} parent=5 // pred_region
        // Predicated region
        $region33: #{tpu_custom_call.1} parent=31 // pred_check
          %p202 = pneg %p46
        $region34: #{tpu_custom_call.1} parent=31 // pred_check_branch
          %204 = sbr.rel (%p202) target = $region36
        $region35: #{tpu_custom_call.1} parent=31 // pred_region
          %p205 = scmp.lt.s32.totalorder %s21, 1
          %s206 = scalar_select %p205, %s21, 1
          %s207 = smul.addr %s206, 4
          %s208 = smul.addr %s207, 4
          %s209 = scalar_lea.vmem %s0, %s208
        $region36: #{tpu_custom_call.1} parent=31 // pred_fallthru
          _
      $region32: #{tpu_custom_call.1} parent=5 // pred_fallthru
        _
      %p210 = scmp.le.s32.totalorder 1, %s14
      %p211 = scmp.lt.s32.totalorder %s14, 3
      %p212 = pnand %p210, %p211
      %p213 = pneg %p212
      // Predicated region
      $region37: #{tpu_custom_call.1} parent=5 // pred_check
        _
      $region38: #{tpu_custom_call.1} parent=5 // pred_check_branch
        %215 = sbr.rel (%p212) target = $region40
      $region39: #{tpu_custom_call.1} parent=5 // pred_region
        %s216 = ssub.s32 %s14, 1
        %p217 = scmp.lt.s32.totalorder %s23, 1
        %s218 = scalar_select %p217, %s23, 1
        %s219 = smul.addr %s218, 4
        %s220 = smul.addr %s219, 4
        %s221 = scalar_lea.vmem %s0, %s220
        %p222 = pneg %p52
        %p223 = pneg %p49
        %p224 = pneg %p73
        %p225 = pneg %p70
        %p226 = scmp.lt.s32.totalorder %s24, 0
        %s227 = scalar_select %p226, %s24, 0
        %s228 = smul.addr %s227, 4
        %s229 = scalar_lea.vmem %s2, %s228
        %p230 = pneg %p99
        %p231 = pneg %p96
        %p232 = pneg %p120
        %p233 = pneg %p117
        %p234 = pneg %p141
        %p235 = pneg %p138
        %p236 = pneg %p167
        %p237 = pneg %p164
        %s238 = sand.u32 %s154, 1
        %s239 = scalar_lea.sflag [#allocation5], %s238
        %s240 = sand.u32 %s154, 1
        %s241 = scalar_lea.vmem [#allocation4], %s240
        %p242 = scmp.lt.s32.totalorder %s23, 1
        %s243 = scalar_select %p242, %s23, 1
        %s244 = smul.addr %s243, 4
        %s245 = smul.addr %s244, 4
        %s246 = scalar_lea.vmem %s0, %s245
        %p247 = scmp.lt.s32.totalorder %s24, 0
        %s248 = scalar_select %p247, %s24, 0
        %s249 = smul.addr %s248, 4
        %s250 = scalar_lea.vmem %s2, %s249
        %p252 = scmp.eq.s32.totalorder %s24, 0
        // Predicated region
        $region41: #{tpu_custom_call.1} parent=39 // pred_check
          %p253 = pneg %p252
        $region42: #{tpu_custom_call.1} parent=39 // pred_check_branch
          %255 = sbr.rel (%p253) target = $region44
        $region43: #{tpu_custom_call.1} parent=39 // pred_region
          %v256 = vld [vmem:[%s246] sm:$0xff]
          %v257 = vld [vmem:[%s246 + $0x8] sm:$0xff]
          %v258 = vld [vmem:[%s1] sm:$0xf]
          %v259 = vld [vmem:[%s1 + $0x4] sm:$0xf]
          %v260 = vld [vmem:[%s1 + $0x8] sm:$0xf]
          %v261 = vld [vmem:[%s1 + $0xc] sm:$0xf]
          %v262 = vld [vmem:[%s1 + $0x10] sm:$0xf]
          %v263 = vld [vmem:[%s1 + $0x14] sm:$0xf]
          %v264 = vld [vmem:[%s1 + $0x18] sm:$0xf]
          %v265 = vld [vmem:[%s1 + $0x1c] sm:$0xf]
          %v266 = vld [vmem:[%s1 + $0x20] sm:$0xf]
          %v267 = vld [vmem:[%s1 + $0x24] sm:$0xf]
          %v268 = vld [vmem:[%s1 + $0x28] sm:$0xf]
          %v269 = vld [vmem:[%s1 + $0x2c] sm:$0xf]
          %v270 = vld [vmem:[%s1 + $0x30] sm:$0xf]
          %v271 = vld [vmem:[%s1 + $0x34] sm:$0xf]
          %v272 = vld [vmem:[%s1 + $0x38] sm:$0xf]
          %v273 = vld [vmem:[%s1 + $0x3c] sm:$0xf]
          %v274 = vld [vmem:[%s1 + $0x40] sm:$0xf]
          %v275 = vld [vmem:[%s1 + $0x44] sm:$0xf]
          %v276 = vld [vmem:[%s1 + $0x48] sm:$0xf]
          %v277 = vld [vmem:[%s1 + $0x4c] sm:$0xf]
          %v278 = vld [vmem:[%s1 + $0x50] sm:$0xf]
          %v279 = vld [vmem:[%s1 + $0x54] sm:$0xf]
          %v280 = vld [vmem:[%s1 + $0x58] sm:$0xf]
          %v281 = vld [vmem:[%s1 + $0x5c] sm:$0xf]
          %v284 = vunpack.c.l.b16 %v256
          %v285 = vunpack.c.h.b16 %v256
          %v286 = vunpack.c.l.b16 %v257
          %v287 = vunpack.c.h.b16 %v257
          %v288 = vpack.c.b16 %v286, %v284
          %v289 = vpack.c.b16 %v287, %v285
          %v315 = vunpack.c.l.b16 %v258
          %v316 = vunpack.c.l.b16 %v259
          %v317 = vunpack.c.l.b16 %v260
          %v318 = vunpack.c.l.b16 %v261
          %v319 = vunpack.c.l.b16 %v262
          %v320 = vunpack.c.l.b16 %v263
          %v321 = vunpack.c.l.b16 %v264
          %v322 = vunpack.c.l.b16 %v265
          %v323 = vunpack.c.l.b16 %v266
          %v324 = vunpack.c.l.b16 %v267
          %v325 = vunpack.c.l.b16 %v268
          %v326 = vunpack.c.l.b16 %v269
          %v327 = vunpack.c.l.b16 %v270
          %v328 = vunpack.c.l.b16 %v271
          %v329 = vunpack.c.l.b16 %v272
          %v330 = vunpack.c.l.b16 %v273
          %v331 = vunpack.c.l.b16 %v274
          %v332 = vunpack.c.l.b16 %v275
          %v333 = vunpack.c.l.b16 %v276
          %v334 = vunpack.c.l.b16 %v277
          %v335 = vunpack.c.l.b16 %v278
          %v336 = vunpack.c.l.b16 %v279
          %v337 = vunpack.c.l.b16 %v280
          %v338 = vunpack.c.l.b16 %v281
          %v339 = vpack.c.b16 %v316, %v315
          %v340 = vpack.c.b16 %v318, %v317
          %v341 = vpack.c.b16 %v320, %v319
          %v342 = vpack.c.b16 %v322, %v321
          %v343 = vpack.c.b16 %v324, %v323
          %v344 = vpack.c.b16 %v326, %v325
          %v345 = vpack.c.b16 %v328, %v327
          %v346 = vpack.c.b16 %v330, %v329
          %v347 = vpack.c.b16 %v332, %v331
          %v348 = vpack.c.b16 %v334, %v333
          %v349 = vpack.c.b16 %v336, %v335
          %v350 = vpack.c.b16 %v338, %v337
          %vm363 = vcmask 523264
          %v365 = vsel %vm363, %v289, 0
          %367 = vmatprep.subr.bf16.mxu0 0
          %368 = vmatpush1.bf16.msra.mxu0 %v346
          %369 = vmatprep.subr.bf16.mxu0 0
          %370 = vmatpush1.bf16.msra.mxu0 %v345
          %371 = vmatprep.subr.bf16.mxu0 0
          %372 = vmatpush1.bf16.msra.mxu0 %v344
          %373 = vmatprep.subr.bf16.mxu0 0
          %374 = vmatpush1.bf16.msra.mxu0 %v343
          %375 = vmatprep.subr.bf16.mxu0 0
          %376 = vmatpush1.bf16.msra.mxu0 %v342
          %377 = vmatprep.subr.bf16.mxu0 0
          %378 = vmatpush1.bf16.msra.mxu0 %v341
          %379 = vmatprep.subr.bf16.mxu0 0
          %380 = vmatpush1.bf16.msra.mxu0 %v340
          %381 = vmatprep.subr.bf16.mxu0 0
          %382 = vmatpush1.bf16.msra.mxu0 %v339
          %383 = vmatprep.subr.bf16.mxu0 0
          %384 = vmatpush2.bf16.msra.mxu0 0
          %385 = vmatprep.subr.bf16.mxu0 0
          %386 = vmatpush2.bf16.msra.mxu0 0
          %387 = vmatprep.subr.bf16.mxu0 0
          %388 = vmatpush2.bf16.msra.mxu0 0
          %389 = vmatprep.subr.bf16.mxu0 0
          %390 = vmatpush2.bf16.msra.mxu0 0
          %391 = vmatprep.subr.bf16.mxu0 0
          %392 = vmatpush2.bf16.msra.mxu0 %v350
          %393 = vmatprep.subr.bf16.mxu0 0
          %394 = vmatpush2.bf16.msra.mxu0 %v349
          %395 = vmatprep.subr.bf16.mxu0 0
          %396 = vmatpush2.bf16.msra.mxu0 %v348
          %397 = vmatprep.subr.bf16.mxu0 0
          %398 = vmatpush2.bf16.msra.mxu0 %v347
          %399 = vmatprep.mubr.bf16.mxu0 %v365
          %400 = vmatmul.mubr.bf16.gmra.mxu0 %v288
          %v401 = vpop.f32.mrf.mxu0
          %v402 = vadd.f32 0.0, %v401
          %v403 = vpop.f32.mrf.mxu0
          %v404 = vpop.f32.mrf.mxu0
          %v405 = vadd.f32 0.0, %v404
          %v406 = vpop.f32.mrf.mxu0
          %407 = vdwg.mxu0
          %v408 = vpack.c.bf16 %v405, %v402
          %v410 = vunpack.c.l.b16 %v408
          %v411 = vunpack.c.h.b16 %v408
          %v412 = vpack.c.b16 %v410, %v410
          %v413 = vpack.c.b16 %v411, %v411
          %vm416 = vcmask 257024
          %417 = vst.msk [vmem:[#allocation2] sm:$0xf] %vm416, %v412
          %418 = vst.msk [vmem:[#allocation2 + $0x4] sm:$0xf] %vm416, %v413
          %vm419 = vcmask 122880
          %420 = vst.msk [vmem:[#allocation3] sm:$0x1] %vm419, 0.0
        $region44: #{tpu_custom_call.1} parent=39 // pred_fallthru
          _
        %v421 = vld [vmem:[#allocation2] sm:$0xf]
        %v422 = vld [vmem:[#allocation2 + $0x4] sm:$0xf]
        %v423 = vld [vmem:[%s250] sm:$0xf]
        %v424 = vld [vmem:[%s250 + $0x4] sm:$0xf]
        %v425 = vld [vmem:[%s250 + $0x8] sm:$0xf]
        %v426 = vld [vmem:[%s250 + $0xc] sm:$0xf]
        %v429 = vunpack.c.l.b16 %v421
        %v430 = vunpack.c.l.b16 %v422
        %v431 = vpack.c.b16 %v430, %v429
        %v436 = vunpack.c.l.b16 %v423
        %v437 = vunpack.c.l.b16 %v424
        %v438 = vunpack.c.l.b16 %v425
        %v439 = vunpack.c.l.b16 %v426
        %v440 = vpack.c.b16 %v437, %v436
        %v441 = vpack.c.b16 %v439, %v438
        %vm444 = vcmask 261120
        %v446 = vsel %vm444, %v431, 0
        %448 = vmatprep.subr.bf16.mxu0 0
        %449 = vmatpush1.bf16.msra.mxu0 0
        %450 = vmatprep.subr.bf16.mxu0 0
        %451 = vmatpush1.bf16.msra.mxu0 0
        %452 = vmatprep.subr.bf16.mxu0 0
        %453 = vmatpush1.bf16.msra.mxu0 0
        %454 = vmatprep.subr.bf16.mxu0 0
        %455 = vmatpush1.bf16.msra.mxu0 0
        %456 = vmatprep.subr.bf16.mxu0 0
        %457 = vmatpush1.bf16.msra.mxu0 0
        %458 = vmatprep.subr.bf16.mxu0 0
        %459 = vmatpush1.bf16.msra.mxu0 0
        %460 = vmatprep.subr.bf16.mxu0 0
        %461 = vmatpush1.bf16.msra.mxu0 %v441
        %462 = vmatprep.subr.bf16.mxu0 0
        %463 = vmatpush1.bf16.msra.mxu0 %v440
        %464 = vmatprep.subr.bf16.mxu0 0
        %465 = vmatpush2.bf16.msra.mxu0 0
        %466 = vmatprep.subr.bf16.mxu0 0
        %467 = vmatpush2.bf16.msra.mxu0 0
        %468 = vmatprep.subr.bf16.mxu0 0
        %469 = vmatpush2.bf16.msra.mxu0 0
        %470 = vmatprep.subr.bf16.mxu0 0
        %471 = vmatpush2.bf16.msra.mxu0 0
        %472 = vmatprep.subr.bf16.mxu0 0
        %473 = vmatpush2.bf16.msra.mxu0 0
        %474 = vmatprep.subr.bf16.mxu0 0
        %475 = vmatpush2.bf16.msra.mxu0 0
        %476 = vmatprep.subr.bf16.mxu0 0
        %477 = vmatpush2.bf16.msra.mxu0 0
        %478 = vmatprep.subr.bf16.mxu0 0
        %479 = vmatpush2.bf16.msra.mxu0 0
        %480 = vmatprep.mubr.bf16.mxu0 0
        %481 = vmatmul.mubr.bf16.gmra.mxu0 %v446
        %v482 = vpop.f32.mrf.mxu0
        %v483 = vadd.f32 0.0, %v482
        %v484 = vpop.f32.mrf.mxu0
        %v485 = vpop.f32.mrf.mxu0
        %v486 = vadd.f32 0.0, %v485
        %v487 = vpop.f32.mrf.mxu0
        %488 = vdwg.mxu0
        %vm489 = vcmask 64512
        %v490 = vsel %vm489, %v483, -inf
        %v491 = vsel %vm489, %v486, -inf
        %v492 = vmax.f32 %v490, %v491
        %v493 = vrot.slane %v492, 4
        %v494 = vmax.f32 %v492, %v493
        %v495 = vrot.slane %v494, 2
        %v496 = vmax.f32 %v494, %v495
        %v497 = vrot.slane %v496, 1
        %v498 = vmax.f32 %v496, %v497
        %vm499 = vcmp.eq.f32.partialorder %v483, %v498
        %vm500 = vcmp.eq.f32.partialorder %v486, %v498
        %v501 = vsel %vm499, 1, 0
        %v502 = vsel %vm500, 1, 0
        %v503 = vcvt.s32.f32 %v501
        %v504 = vcvt.s32.f32 %v502
        %v505 = vsel %vm499, -1e+30, %v483
        %v506 = vsel %vm500, -1e+30, %v486
        %v507 = vsel %vm489, %v505, -inf
        %v508 = vsel %vm489, %v506, -inf
        %v509 = vmax.f32 %v507, %v508
        %v510 = vrot.slane %v509, 4
        %v511 = vmax.f32 %v509, %v510
        %v512 = vrot.slane %v511, 2
        %v513 = vmax.f32 %v511, %v512
        %v514 = vrot.slane %v513, 1
        %v515 = vmax.f32 %v513, %v514
        %v516 = vsub.f32 %v515, %v498
        %v517 = vmul.f32 %v516, 1.442695
        %v518 = vpow.pop %v517
        %v519 = vadd.f32 %v518, 1.0
        %vm520 = vcmp.eq.f32.partialorder %v505, %v515
        %vm521 = vcmp.eq.f32.partialorder %v506, %v515
        %v522 = vsel %vm520, %v518, %v503
        %v523 = vsel %vm521, %v518, %v504
        %v524 = vsel %vm520, -1e+30, %v505
        %v525 = vsel %vm521, -1e+30, %v506
        %v526 = vsel %vm489, %v524, -inf
        %v527 = vsel %vm489, %v525, -inf
        %v528 = vmax.f32 %v526, %v527
        %v529 = vrot.slane %v528, 4
        %v530 = vmax.f32 %v528, %v529
        %v531 = vrot.slane %v530, 2
        %v532 = vmax.f32 %v530, %v531
        %v533 = vrot.slane %v532, 1
        %v534 = vmax.f32 %v532, %v533
        %v535 = vsub.f32 %v534, %v498
        %v536 = vmul.f32 %v535, 1.442695
        %v537 = vpow.pop %v536
        %v538 = vadd.f32 %v519, %v537
        %vm539 = vcmp.eq.f32.partialorder %v524, %v534
        %vm540 = vcmp.eq.f32.partialorder %v525, %v534
        %v541 = vsel %vm539, %v537, %v522
        %v542 = vsel %vm540, %v537, %v523
        %v543 = vsel %vm539, -1e+30, %v524
        %v544 = vsel %vm540, -1e+30, %v525
        %v545 = vsel %vm489, %v543, -inf
        %v546 = vsel %vm489, %v544, -inf
        %v547 = vmax.f32 %v545, %v546
        %v548 = vrot.slane %v547, 4
        %v549 = vmax.f32 %v547, %v548
        %v550 = vrot.slane %v549, 2
        %v551 = vmax.f32 %v549, %v550
        %v552 = vrot.slane %v551, 1
        %v553 = vmax.f32 %v551, %v552
        %v554 = vsub.f32 %v553, %v498
        %v555 = vmul.f32 %v554, 1.442695
        %v556 = vpow.pop %v555
        %v557 = vadd.f32 %v538, %v556
        %vm558 = vcmp.eq.f32.partialorder %v543, %v553
        %vm559 = vcmp.eq.f32.partialorder %v544, %v553
        %v560 = vsel %vm558, %v556, %v541
        %v561 = vsel %vm559, %v556, %v542
        %v562 = vlaneseq
        %v563 = vand.u32 %v562, 127
        %s564 = smul.u32 %s24, 8
        %v565 = vstv %s564
        %v566 = vadd.s32 %v563, %v565
        %vm567 = vcmp.lt.s32.totalorder %v566, 8
        %v568 = vrcp.pop %v557
        %v569 = vsel %vm567, %v568, 0.0
        %v570 = vld [vmem:[#allocation3] sm:$0x1]
        %v571 = vmul.f32 %v560, %v569
        %v572 = vmul.f32 %v561, %v569
        %v573 = vsel %vm489, %v571, 0.0
        %574 = vadd.xlane.f32.xlu0 %v573
        %v575 = vpop.xlane.xlu0 %574
        %v576 = vsel %vm489, %v572, 0.0
        %577 = vadd.xlane.f32.xlu0 %v576
        %v578 = vpop.xlane.xlu0 %577
        %v581 = vlaneseq
        %v582 = vshrl.u32 %v581, 7
        %v583 = vsub.s32 0, %v582
        %v584 = vrot.slane %v575, %v583
        %v585 = vlaneseq
        %v586 = vshrl.u32 %v585, 7
        %v587 = vsub.s32 1, %v586
        %v588 = vrot.slane %v575, %v587
        %v589 = vlaneseq
        %v590 = vshrl.u32 %v589, 7
        %v591 = vsub.s32 2, %v590
        %v592 = vrot.slane %v575, %v591
        %v593 = vlaneseq
        %v594 = vshrl.u32 %v593, 7
        %v595 = vsub.s32 3, %v594
        %v596 = vrot.slane %v575, %v595
        %v597 = vlaneseq
        %v598 = vshrl.u32 %v597, 7
        %v599 = vsub.s32 4, %v598
        %v600 = vrot.slane %v575, %v599
        %v601 = vlaneseq
        %v602 = vshrl.u32 %v601, 7
        %v603 = vsub.s32 5, %v602
        %v604 = vrot.slane %v575, %v603
        %v605 = vlaneseq
        %v606 = vshrl.u32 %v605, 7
        %v607 = vsub.s32 6, %v606
        %v608 = vrot.slane %v575, %v607
        %v609 = vlaneseq
        %v610 = vshrl.u32 %v609, 7
        %v611 = vsub.s32 7, %v610
        %v612 = vrot.slane %v575, %v611
        %v613 = vlaneseq
        %v614 = vshrl.u32 %v613, 7
        %v615 = vsub.s32 0, %v614
        %v616 = vrot.slane %v578, %v615
        %v617 = vlaneseq
        %v618 = vshrl.u32 %v617, 7
        %v619 = vsub.s32 1, %v618
        %v620 = vrot.slane %v578, %v619
        %v621 = vlaneseq
        %v622 = vshrl.u32 %v621, 7
        %v623 = vsub.s32 2, %v622
        %v624 = vrot.slane %v578, %v623
        %v625 = vlaneseq
        %v626 = vshrl.u32 %v625, 7
        %v627 = vsub.s32 3, %v626
        %v628 = vrot.slane %v578, %v627
        %v629 = vlaneseq
        %v630 = vshrl.u32 %v629, 7
        %v631 = vsub.s32 4, %v630
        %v632 = vrot.slane %v578, %v631
        %v633 = vlaneseq
        %v634 = vshrl.u32 %v633, 7
        %v635 = vsub.s32 5, %v634
        %v636 = vrot.slane %v578, %v635
        %v637 = vlaneseq
        %v638 = vshrl.u32 %v637, 7
        %v639 = vsub.s32 6, %v638
        %v640 = vrot.slane %v578, %v639
        %v641 = vlaneseq
        %v642 = vshrl.u32 %v641, 7
        %v643 = vsub.s32 7, %v642
        %v644 = vrot.slane %v578, %v643
        %v645 = vcombine.low %v584, %v588
        %v646 = vcombine.low %v592, %v596
        %v647 = vcombine.low %v600, %v604
        %v648 = vcombine.low %v608, %v612
        %v650 = vunpack.c.l.s4 1966171168
        %v651 = vunpack.c.0.s8 %v650
        %v652 = vlaneseq
        %v653 = vshrl.u32 %v652, 7
        %v654 = vsub.s32 %v651, %v653
        %v655 = vrot.slane %v645, %v654
        %v657 = vunpack.c.l.s4 1966171168
        %v658 = vunpack.c.0.s8 %v657
        %v659 = vlaneseq
        %v660 = vshrl.u32 %v659, 7
        %v661 = vsub.s32 %v658, %v660
        %v662 = vrot.slane %v646, %v661
        %v664 = vunpack.c.l.s4 1966171168
        %v665 = vunpack.c.0.s8 %v664
        %v666 = vlaneseq
        %v667 = vshrl.u32 %v666, 7
        %v668 = vsub.s32 %v665, %v667
        %v669 = vrot.slane %v647, %v668
        %v671 = vunpack.c.l.s4 1966171168
        %v672 = vunpack.c.0.s8 %v671
        %v673 = vlaneseq
        %v674 = vshrl.u32 %v673, 7
        %v675 = vsub.s32 %v672, %v674
        %v676 = vrot.slane %v648, %v675
        %v677 = vcombine.low %v655, %v662
        %v678 = vcombine.low %v669, %v676
        %v680 = vunpack.c.l.s4 1966171168
        %v681 = vunpack.c.0.s8 %v680
        %v682 = vlaneseq
        %v683 = vshrl.u32 %v682, 7
        %v684 = vsub.s32 %v681, %v683
        %v685 = vrot.slane %v677, %v684
        %v687 = vunpack.c.l.s4 1966171168
        %v688 = vunpack.c.0.s8 %v687
        %v689 = vlaneseq
        %v690 = vshrl.u32 %v689, 7
        %v691 = vsub.s32 %v688, %v690
        %v692 = vrot.slane %v678, %v691
        %v693 = vcombine.low %v685, %v692
        %v694 = vcombine.low %v616, %v620
        %v695 = vcombine.low %v624, %v628
        %v696 = vcombine.low %v632, %v636
        %v697 = vcombine.low %v640, %v644
        %v699 = vunpack.c.l.s4 1966171168
        %v700 = vunpack.c.0.s8 %v699
        %v701 = vlaneseq
        %v702 = vshrl.u32 %v701, 7
        %v703 = vsub.s32 %v700, %v702
        %v704 = vrot.slane %v694, %v703
        %v706 = vunpack.c.l.s4 1966171168
        %v707 = vunpack.c.0.s8 %v706
        %v708 = vlaneseq
        %v709 = vshrl.u32 %v708, 7
        %v710 = vsub.s32 %v707, %v709
        %v711 = vrot.slane %v695, %v710
        %v713 = vunpack.c.l.s4 1966171168
        %v714 = vunpack.c.0.s8 %v713
        %v715 = vlaneseq
        %v716 = vshrl.u32 %v715, 7
        %v717 = vsub.s32 %v714, %v716
        %v718 = vrot.slane %v696, %v717
        %v720 = vunpack.c.l.s4 1966171168
        %v721 = vunpack.c.0.s8 %v720
        %v722 = vlaneseq
        %v723 = vshrl.u32 %v722, 7
        %v724 = vsub.s32 %v721, %v723
        %v725 = vrot.slane %v697, %v724
        %v726 = vcombine.low %v704, %v711
        %v727 = vcombine.low %v718, %v725
        %v729 = vunpack.c.l.s4 1966171168
        %v730 = vunpack.c.0.s8 %v729
        %v731 = vlaneseq
        %v732 = vshrl.u32 %v731, 7
        %v733 = vsub.s32 %v730, %v732
        %v734 = vrot.slane %v726, %v733
        %v736 = vunpack.c.l.s4 1966171168
        %v737 = vunpack.c.0.s8 %v736
        %v738 = vlaneseq
        %v739 = vshrl.u32 %v738, 7
        %v740 = vsub.s32 %v737, %v739
        %v741 = vrot.slane %v727, %v740
        %v742 = vcombine.low %v734, %v741
        %743 = vset.pattern.permute.xlu0 0
        %744 = vperm.xlu0 %743, %v693
        %v745 = vpop.permute.xlu0 %744
        %746 = vset.pattern.permute.xlu0 0
        %747 = vperm.xlu0 %746, %v742
        %v748 = vpop.permute.xlu0 %747
        %v749 = vlaneseq
        %v750 = vshrl.u32 %v749, 7
        %v751 = vsub.s32 %v563, %v750
        %v752 = vrot.slane %v745, %v751
        %v753 = vadd.s32 %v563, 4294967288
        %v754 = vlaneseq
        %v755 = vshrl.u32 %v754, 7
        %v756 = vsub.s32 %v753, %v755
        %v757 = vrot.slane %v748, %v756
        %vm758 = vcmask 130112
        %v759 = vsel %vm758, %v757, %v752
        %v761 = vunpack.c.l.s4 1966171168
        %v762 = vunpack.c.0.s8 %v761
        %v763 = vlaneseq
        %v764 = vshrl.u32 %v763, 7
        %v765 = vsub.s32 %v762, %v764
        %v766 = vrot.slane %v759, %v765
        %v768 = vunpack.c.l.s4 1966171168
        %v769 = vunpack.c.0.s8 %v768
        %v770 = vlaneseq
        %v771 = vshrl.u32 %v770, 7
        %v772 = vsub.s32 %v769, %v771
        %v773 = vrot.slane %v766, %v772
        %v775 = vadd.f32 %v570, %v773
        %vm776 = vcmask 122880
        %777 = vst.msk [vmem:[#allocation3] sm:$0x1] %vm776, %v775
        // Predicated region
        $region45: #{tpu_custom_call.1} parent=39 // pred_check
          %p778 = pneg %p252
        $region46: #{tpu_custom_call.1} parent=39 // pred_check_branch
          %780 = sbr.rel (%p778) target = $region48
        $region47: #{tpu_custom_call.1} parent=39 // pred_region
          %v781 = vld [vmem:[#allocation3] sm:$0x1]
          %v782 = vmul.f32 %v781, 0.125
          %v783 = vpack.c.bf16 %v782, %v782
          %v784 = vld [vmem:[#allocation2] sm:$0xf]
          %v785 = vld [vmem:[#allocation2 + $0x4] sm:$0xf]
          %v788 = vunpack.c.l.b16 %v784
          %v789 = vunpack.c.l.b16 %v785
          %v790 = vpack.c.b16 %v789, %v788
          %vm792 = vcmask 130048
          %v794 = vsel %vm792, %v783, 0
          %796 = vmatprep.subr.bf16.mxu0 0
          %797 = vmatpush1.bf16.msra.mxu0 0
          %798 = vmatprep.subr.bf16.mxu0 0
          %799 = vmatpush1.bf16.msra.mxu0 0
          %800 = vmatprep.subr.bf16.mxu0 0
          %801 = vmatpush1.bf16.msra.mxu0 0
          %802 = vmatprep.subr.bf16.mxu0 0
          %803 = vmatpush1.bf16.msra.mxu0 0
          %804 = vmatprep.subr.bf16.mxu0 0
          %805 = vmatpush1.bf16.msra.mxu0 0
          %806 = vmatprep.subr.bf16.mxu0 0
          %807 = vmatpush1.bf16.msra.mxu0 0
          %808 = vmatprep.subr.bf16.mxu0 0
          %809 = vmatpush1.bf16.msra.mxu0 0
          %810 = vmatprep.subr.bf16.mxu0 0
          %811 = vmatpush1.bf16.msra.mxu0 %v790
          %812 = vmatprep.subr.bf16.mxu0 0
          %813 = vmatpush2.bf16.msra.mxu0 0
          %814 = vmatprep.subr.bf16.mxu0 0
          %815 = vmatpush2.bf16.msra.mxu0 0
          %816 = vmatprep.subr.bf16.mxu0 0
          %817 = vmatpush2.bf16.msra.mxu0 0
          %818 = vmatprep.subr.bf16.mxu0 0
          %819 = vmatpush2.bf16.msra.mxu0 0
          %820 = vmatprep.subr.bf16.mxu0 0
          %821 = vmatpush2.bf16.msra.mxu0 0
          %822 = vmatprep.subr.bf16.mxu0 0
          %823 = vmatpush2.bf16.msra.mxu0 0
          %824 = vmatprep.subr.bf16.mxu0 0
          %825 = vmatpush2.bf16.msra.mxu0 0
          %826 = vmatprep.subr.bf16.mxu0 0
          %827 = vmatpush2.bf16.msra.mxu0 0
          %828 = vmatprep.mubr.bf16.mxu0 0
          %829 = vmatmul.mubr.bf16.gmra.mxu0 %v794
          %v830 = vpop.f32.mrf.mxu0
          %v831 = vadd.f32 0.0, %v830
          %v832 = vpop.f32.mrf.mxu0
          %v833 = vpop.f32.mrf.mxu0
          %v834 = vpop.f32.mrf.mxu0
          %835 = vdwg.mxu0
          %v836 = vmax.f32 %v831, 0.0
          %v837 = vpack.c.bf16 %v836, %v836
          %v838 = vld [vmem:[%s3] sm:$0xf]
          %v839 = vld [vmem:[%s3 + $0x4] sm:$0xf]
          %v840 = vld [vmem:[%s3 + $0x8] sm:$0xf]
          %v841 = vld [vmem:[%s3 + $0xc] sm:$0xf]
          %v842 = vld [vmem:[%s4] sm:$0x1]
          %v847 = vunpack.c.l.b16 %v838
          %v848 = vunpack.c.l.b16 %v839
          %v849 = vunpack.c.l.b16 %v840
          %v850 = vunpack.c.l.b16 %v841
          %v851 = vpack.c.b16 %v848, %v847
          %v852 = vpack.c.b16 %v850, %v849
          %v856 = vsel %vm444, %v837, 0
          %858 = vmatprep.subr.bf16.mxu0 0
          %859 = vmatpush1.bf16.msra.mxu0 0
          %860 = vmatprep.subr.bf16.mxu0 0
          %861 = vmatpush1.bf16.msra.mxu0 0
          %862 = vmatprep.subr.bf16.mxu0 0
          %863 = vmatpush1.bf16.msra.mxu0 0
          %864 = vmatprep.subr.bf16.mxu0 0
          %865 = vmatpush1.bf16.msra.mxu0 0
          %866 = vmatprep.subr.bf16.mxu0 0
          %867 = vmatpush1.bf16.msra.mxu0 0
          %868 = vmatprep.subr.bf16.mxu0 0
          %869 = vmatpush1.bf16.msra.mxu0 0
          %870 = vmatprep.subr.bf16.mxu0 0
          %871 = vmatpush1.bf16.msra.mxu0 %v852
          %872 = vmatprep.subr.bf16.mxu0 0
          %873 = vmatpush1.bf16.msra.mxu0 %v851
          %874 = vmatprep.subr.bf16.mxu0 0
          %875 = vmatpush2.bf16.msra.mxu0 0
          %876 = vmatprep.subr.bf16.mxu0 0
          %877 = vmatpush2.bf16.msra.mxu0 0
          %878 = vmatprep.subr.bf16.mxu0 0
          %879 = vmatpush2.bf16.msra.mxu0 0
          %880 = vmatprep.subr.bf16.mxu0 0
          %881 = vmatpush2.bf16.msra.mxu0 0
          %882 = vmatprep.subr.bf16.mxu0 0
          %883 = vmatpush2.bf16.msra.mxu0 0
          %884 = vmatprep.subr.bf16.mxu0 0
          %885 = vmatpush2.bf16.msra.mxu0 0
          %886 = vmatprep.subr.bf16.mxu0 0
          %887 = vmatpush2.bf16.msra.mxu0 0
          %888 = vmatprep.subr.bf16.mxu0 0
          %889 = vmatpush2.bf16.msra.mxu0 0
          %890 = vmatprep.mubr.bf16.mxu0 0
          %891 = vmatmul.mubr.bf16.gmra.mxu0 %v856
          %v892 = vpop.f32.mrf.mxu0
          %v893 = vadd.f32 %v842, %v892
          %v894 = vpop.f32.mrf.mxu0
          %v895 = vpop.f32.mrf.mxu0
          %v896 = vpop.f32.mrf.mxu0
          %897 = vdwg.mxu0
          %898 = vst [vmem:[%s241] sm:$0x1] %v893
        $region48: #{tpu_custom_call.1} parent=39 // pred_fallthru
          _
        %s899 = sand.u32 %s154, 1
        %s900 = scalar_lea.sflag [#allocation5], %s899
        %s901 = sand.u32 %s154, 1
        %s902 = scalar_lea.vmem [#allocation4], %s901
        // Predicated region
        $region49: #{tpu_custom_call.1} parent=39 // pred_check
          %p903 = pneg %p164
        $region50: #{tpu_custom_call.1} parent=39 // pred_check_branch
          %905 = sbr.rel (%p903) target = $region52
        $region51: #{tpu_custom_call.1} parent=39 // pred_region
          %s907 = ssub.s32 16, 16
          %908 = vsyncadd %s900, %s907
          %s909 = smul.addr %s23, 16
          %s910 = scalar_lea.hbm %s5, %s909
          %s912 = sshll.u32 %s902, 4
          %s913 = int_to_ptr.vmem [resolvable:$true] %s912
          %915 = dma.vmem_to_hbm [thread:$0]  %s913, 16, %s910, %s900
        $region52: #{tpu_custom_call.1} parent=39 // pred_fallthru
          _
      $region40: #{tpu_custom_call.1} parent=5 // pred_fallthru
        _
      %p916 = scmp.le.s32.totalorder 2, %s14
      // Predicated region
      $region53: #{tpu_custom_call.1} parent=5 // pred_check
        %p917 = pneg %p916
      $region54: #{tpu_custom_call.1} parent=5 // pred_check_branch
        %919 = sbr.rel (%p917) target = $region56
      $region55: #{tpu_custom_call.1} parent=5 // pred_region
        %s920 = ssub.s32 %s14, 2
        // Predicated region
        $region57: #{tpu_custom_call.1} parent=55 // pred_check
          %p921 = pneg %p170
        $region58: #{tpu_custom_call.1} parent=55 // pred_check_branch
          %923 = sbr.rel (%p921) target = $region60
        $region59: #{tpu_custom_call.1} parent=55 // pred_region
          %s924 = sand.u32 %s155, 1
          %s925 = scalar_lea.sflag [#allocation5], %s924
          %s926 = sand.u32 %s155, 1
          %s927 = scalar_lea.vmem [#allocation4], %s926
          %928 = dma.done %s925, 16
        $region60: #{tpu_custom_call.1} parent=55 // pred_fallthru
          _
      $region56: #{tpu_custom_call.1} parent=5 // pred_fallthru
        _
    $region6: #{tpu_custom_call.1} parent=1 // loop_footer
      %s18 = sadd.s32 1, %s14
    $region7: #{tpu_custom_call.1} parent=1 // loop_footer_branch
      %13 = sbr.rel target = $region3
    $region8: #{tpu_custom_call.1} parent=1 // loop_exit
      _
    %929 = vsyncpa [#allocation5], 1
    %s930 = scalar_lea.sflag [#allocation5], 1
    %931 = vsyncpa %s930, 1

</llo_original>
